<compile_context>
chip_gen: v7x
topology: tpu7x:2x2x1
jax: 0.10.0
libtpu: 0.0.40
codegen_flags: <defaults>
</compile_context>

<pallas_src>
import functools

import jax
import jax.numpy as jnp
from jax.experimental import pallas as pl
from jax.experimental.pallas import tpu as pltpu


def _round_up(x, m):
    return ((x + m - 1) // m) * m


def _onenet_kernel(use_bf16,
                   x_ref, w0_ref, b0_ref, wsp_ref, bsp_ref, wf_ref, bf_ref,
                   r_ref, pre_ref, h_ref):
    # Grid axis = layer index i in [0, L]:
    #   i == 0      : 1 -> H broadcast layer (rows 0..B-1 = a stream, row B = b stream,
    #                 rows > B = zero padding -> identical to the b row, sliced off later)
    #   i in [1, L] : H x H hidden layer i-1 on the MXU
    #   i == L      : additionally the final H -> 1 lane reduction (XLU)
    # x_ref  : (B_pad, 1)   w0_ref/b0_ref/wf_ref: (1, H)   bf_ref: (1, 1)
    # wsp_ref: (1, H, H) current layer's weights, (in, out) layout (f32 or bf16)
    # bsp_ref: (1, 1, H) current layer's bias, f32
    # r_ref  : (B_pad, 1) resident output (written once at the last step)
    # pre_ref: (1, B_pad, H) this layer's preactivation block (streamed out per step)
    # h_ref  : (B_pad, H) f32 VMEM scratch carrying the post-tanh activation
    i = pl.program_id(0)
    last = pl.num_programs(0) - 1

    @pl.when(i == 0)
    def _():
        # First layer has in_features == 1 -> a broadcasted multiply is exact.
        hp = x_ref[...] * w0_ref[...] + b0_ref[...]          # (B_pad, H), f32
        pre_ref[0] = hp.astype(pre_ref.dtype)
        h_ref[...] = jnp.tanh(hp)

    @pl.when(i > 0)
    def _():
        h = h_ref[...]                                       # (B_pad, H), f32
        lhs = h.astype(jnp.bfloat16) if use_bf16 else h
        hp = jnp.dot(lhs, wsp_ref[0],
                     preferred_element_type=jnp.float32) + bsp_ref[0]
        pre_ref[0] = hp.astype(pre_ref.dtype)
        h_ref[...] = jnp.tanh(hp)

    @pl.when(i == last)
    def _():
        # Final layer: out_features == 1 -> lane reduction (XLU) instead of an N=1 matmul.
        h = h_ref[...]
        r_ref[...] = (jnp.sum(h * wf_ref[...], axis=-1, keepdims=True)
                      + bf_ref[...])                          # (B_pad, 1)


def onenet_forward(x, params, n_layers, time=None, use_bf16=True,
                   pre_dtype=jnp.float32):
    """x: (B, 1) float32.  Returns (r_a, r_b, preactivations) like the PyTorch module,
    with preactivations stacked into one array of shape (n_layers+1, 2, B, H).
    `time` is accepted for parity with the PyTorch signature and ignored.
    `use_bf16=True` (default) casts only the MXU operands (weights + activations)
    to bf16; accumulation, tanh and all stores stay f32."""
    del time
    assert n_layers >= 1
    B = x.shape[0]
    H = params["w0"].shape[1]
    L = n_layers

    # Fused rows: 0..B-1 = a stream, row B = the single shared b-stream row (zero
    # input), rows B+1..B_pad-1 = sublane padding (also zero -> harmless duplicates
    # of the b row, sliced off below).
    B_pad = _round_up(B + 1, 8)
    x_fused = jnp.concatenate([x, jnp.zeros((B_pad - B, 1), x.dtype)], axis=0)

    wsp = params["wsp"].astype(jnp.bfloat16) if use_bf16 else params["wsp"]
    w_itemsize = 2 if use_bf16 else 4
    pre_itemsize = jnp.dtype(pre_dtype).itemsize

    kernel = functools.partial(_onenet_kernel, use_bf16)
    n_steps = L + 1

    out_shape = (
        jax.ShapeDtypeStruct((B_pad, 1), jnp.float32),          # fused r (a rows + b row)
        jax.ShapeDtypeStruct((L + 1, B_pad, H), pre_dtype),     # dedup'd preactivations
    )

    grid_spec = pltpu.PrefetchScalarGridSpec(
        num_scalar_prefetch=0,
        grid=(n_steps,),
        in_specs=[
            pl.BlockSpec((B_pad, 1), lambda i: (0, 0)),                        # x (fused)
            pl.BlockSpec((1, H), lambda i: (0, 0)),                            # w0
            pl.BlockSpec((1, H), lambda i: (0, 0)),                            # b0
            pl.BlockSpec((1, H, H), lambda i: (jnp.maximum(i - 1, 0), 0, 0)),  # wsp[i-1]
            pl.BlockSpec((1, 1, H), lambda i: (jnp.maximum(i - 1, 0), 0, 0)),  # bsp[i-1]
            pl.BlockSpec((1, H), lambda i: (0, 0)),                            # wf (row)
            pl.BlockSpec((1, 1), lambda i: (0, 0)),                            # bf
        ],
        out_specs=[
            pl.BlockSpec((B_pad, 1), lambda i: (0, 0)),          # r: resident accumulator
            pl.BlockSpec((1, B_pad, H), lambda i: (i, 0, 0)),    # pre: streamed per layer
        ],
        scratch_shapes=[pltpu.VMEM((B_pad, H), jnp.float32)],    # carried activation h
    )

    # VMEM budget sized for the per-layer tiles (double-buffered weight + pre tiles,
    # activation scratch, a few elementwise temps) — safe for v7x's 64 MiB.
    wsp_tile = H * H * w_itemsize
    pre_tile = B_pad * H * pre_itemsize
    h_bytes = B_pad * H * 4
    need = 2 * wsp_tile + 2 * pre_tile + h_bytes + 6 * B_pad * H * 4 + (1 << 20)
    vmem_limit = int(min(64 * 1024 * 1024, max(8 * 1024 * 1024, 2 * need)))

    cost = pl.CostEstimate(
        flops=2 * B_pad * H * H * L + 4 * B_pad * H,
        transcendentals=(L + 1) * B_pad * H,
        bytes_accessed=(B_pad * 4                       # x
                        + 2 * H * 4 + H * 4 + 4         # w0, b0, wf, bf
                        + L * H * H * w_itemsize        # wsp
                        + L * H * 4                     # bsp
                        + B_pad * 4                     # r
                        + (L + 1) * B_pad * H * pre_itemsize),  # pre
    )

    r, pre_fused = pl.pallas_call(
        kernel,
        out_shape=out_shape,
        grid_spec=grid_spec,
        compiler_params=pltpu.CompilerParams(
            dimension_semantics=("arbitrary",),         # layer axis carries h -> sequential
            vmem_limit_bytes=vmem_limit),
        cost_estimate=cost,
    )(x_fused, params["w0"], params["b0"], wsp, params["bsp"],
      params["wf"], params["bf"])

    # Un-deduplicate in the wrapper (cheap XLA broadcasts, outside the kernel).
    ra = r[:B]                                                   # (B, 1)
    rb = jnp.broadcast_to(r[B:B + 1], (B, 1))                    # (B, 1)
    pre_a = pre_fused[:, :B, :]                                  # (L+1, B, H)
    pre_b = jnp.broadcast_to(pre_fused[:, B:B + 1, :], (L + 1, B, H))
    pre = jnp.stack((pre_a, pre_b), axis=1)                      # (L+1, 2, B, H)
    return ra, rb, pre


def init_params(key, n_units, n_layers):
    """Deterministic synthetic parameters (shapes follow OneNet.__init__)."""
    ks = jax.random.split(key, 6)
    scale_in = 1.0                      # fan_in = 1 for the first layer
    scale_h = 1.0 / jnp.sqrt(n_units)
    return {
        # l: HashLinear(1, n_units, 1)   -> W (1, H) in (in, out) layout, bias (1, H)
        "w0": jax.random.normal(ks[0], (1, n_units), jnp.float32) * scale_in,
        "b0": jax.random.normal(ks[1], (1, n_units), jnp.float32) * 0.1,
        # l_sp: HashLinear(H, H, n_layers) -> W (L, H, H), bias (L, 1, H)
        "wsp": jax.random.normal(ks[2], (n_layers, n_units, n_units), jnp.float32) * scale_h,
        "bsp": jax.random.normal(ks[3], (n_layers, 1, n_units), jnp.float32) * 0.1,
        # l_final: HashLinear(H, 1, 1) -> W stored as a (1, H) row, bias (1, 1)
        "wf": jax.random.normal(ks[4], (1, n_units), jnp.float32) * scale_h,
        "bf": jax.random.normal(ks[5], (1, 1), jnp.float32) * 0.1,
    }


def onenet_reference(x, params, n_layers):
    """Pure-JAX reference mirroring the PyTorch forward."""
    pre = []
    a = x @ params["w0"] + params["b0"]
    b = jnp.zeros_like(x) @ params["w0"] + params["b0"]
    pre.append(jnp.stack((a, b)))
    a, b = jnp.tanh(a), jnp.tanh(b)
    for i in range(n_layers):
        a = a @ params["wsp"][i] + params["bsp"][i]
        b = b @ params["wsp"][i] + params["bsp"][i]
        pre.append(jnp.stack((a, b)))
        a, b = jnp.tanh(a), jnp.tanh(b)
    ra = a @ params["wf"].T + params["bf"]
    rb = b @ params["wf"].T + params["bf"]
    return ra, rb, jnp.stack(pre)


if __name__ == "__main__":
    # H a multiple of 128 -> lane-dense stores; prefer multiples of 256 on v6e/v7x
    # for full MXU column utilization if H is a free hyperparameter.
    B, H, L = 16, 128, 2
    key = jax.random.PRNGKey(0)
    k_x, k_p = jax.random.split(key)
    x = jax.random.normal(k_x, (B, 1), jnp.float32)
    time = jnp.zeros((B, 1), jnp.float32)   # unused by the forward pass (parity w/ PyTorch)
    params = init_params(k_p, H, L)

    ra_gold, rb_gold, pre_gold = onenet_reference(x, params, L)

    # Default path: bf16 MXU operands (weight DMA halved; accum/tanh/stores stay f32).
    ra, rb, pre = onenet_forward(x, params, L, time)
    jax.block_until_ready((ra, rb, pre))
    assert jnp.allclose(ra, ra_gold, atol=5e-2, rtol=5e-2)
    assert jnp.allclose(rb, rb_gold, atol=5e-2, rtol=5e-2)
    assert jnp.allclose(pre, pre_gold, atol=5e-2, rtol=5e-2)   # pre checked in bf16 path too

    # Exact f32 path.
    ra32, rb32, pre32 = onenet_forward(x, params, L, time, use_bf16=False)
    jax.block_until_ready((ra32, rb32, pre32))
    assert jnp.allclose(ra32, ra_gold, atol=1e-4, rtol=1e-4)
    assert jnp.allclose(rb32, rb_gold, atol=1e-4, rtol=1e-4)
    assert jnp.allclose(pre32, pre_gold, atol=1e-4, rtol=1e-4)

    print("KERNEL_OK")
</pallas_src>

<mosaic_0001>
module attributes {stable_mosaic.version = 11 : i64} {
  func.func @_onenet_kernel(%arg0: i32, %arg1: memref<24x1xf32, #tpu.memory_space<vmem>>, %arg2: memref<1x128xf32, #tpu.memory_space<vmem>>, %arg3: memref<1x128xf32, #tpu.memory_space<vmem>>, %arg4: memref<1x128x128xbf16, #tpu.memory_space<vmem>>, %arg5: memref<1x1x128xf32, #tpu.memory_space<vmem>>, %arg6: memref<1x128xf32, #tpu.memory_space<vmem>>, %arg7: memref<1x1xf32, #tpu.memory_space<vmem>>, %arg8: memref<24x1xf32, #tpu.memory_space<vmem>>, %arg9: memref<1x24x128xf32, #tpu.memory_space<vmem>>, %arg10: memref<24x128xf32, #tpu.memory_space<vmem>>) attributes {dimension_semantics = [#tpu.dimension_semantics<arbitrary>], iteration_bounds = array<i64: 3>, scalar_prefetch = 0 : i64, scratch_operands = 1 : i64, tpu.core_type = #tpu.core_type<tc>, window_params = [{pipeline_mode = #tpu.pipeline_mode<synchronous>, transform_indices = @transform_0, window_bounds = array<i64: 24, 1>}, {pipeline_mode = #tpu.pipeline_mode<synchronous>, transform_indices = @transform_1, window_bounds = array<i64: 1, 128>}, {pipeline_mode = #tpu.pipeline_mode<synchronous>, transform_indices = @transform_2, window_bounds = array<i64: 1, 128>}, {transform_indices = @transform_3, window_bounds = array<i64: 1, 128, 128>}, {transform_indices = @transform_4, window_bounds = array<i64: 1, 1, 128>}, {pipeline_mode = #tpu.pipeline_mode<synchronous>, transform_indices = @transform_5, window_bounds = array<i64: 1, 128>}, {pipeline_mode = #tpu.pipeline_mode<synchronous>, transform_indices = @transform_6, window_bounds = array<i64: 1, 1>}, {pipeline_mode = #tpu.pipeline_mode<synchronous>, transform_indices = @transform_7, window_bounds = array<i64: 24, 1>}, {transform_indices = @transform_8, window_bounds = array<i64: 1, 24, 128>}]} {
    %c0_i32 = arith.constant 0 : i32
    %0 = arith.cmpi eq, %arg0, %c0_i32 : i32
    %1 = arith.extui %0 : i1 to i32
    %c0_i32_0 = arith.constant 0 : i32
    %2 = arith.cmpi ne, %1, %c0_i32_0 : i32
    scf.if %2 {
      %c0 = arith.constant 0 : index
      %c0_4 = arith.constant 0 : index
      %9 = vector.load %arg1[%c0, %c0_4] : memref<24x1xf32, #tpu.memory_space<vmem>>, vector<24x1xf32>
      %c0_5 = arith.constant 0 : index
      %c0_6 = arith.constant 0 : index
      %10 = vector.load %arg2[%c0_5, %c0_6] : memref<1x128xf32, #tpu.memory_space<vmem>>, vector<1x128xf32>
      %11 = vector.broadcast %9 : vector<24x1xf32> to vector<24x128xf32>
      %12 = vector.broadcast %10 : vector<1x128xf32> to vector<24x128xf32>
      %13 = arith.mulf %11, %12 : vector<24x128xf32>
      %c0_7 = arith.constant 0 : index
      %c0_8 = arith.constant 0 : index
      %14 = vector.load %arg3[%c0_7, %c0_8] : memref<1x128xf32, #tpu.memory_space<vmem>>, vector<1x128xf32>
      %15 = vector.broadcast %14 : vector<1x128xf32> to vector<24x128xf32>
      %16 = arith.addf %13, %15 : vector<24x128xf32>
      %c0_9 = arith.constant 0 : index
      %c0_10 = arith.constant 0 : index
      %c0_11 = arith.constant 0 : index
      %17 = vector.load %arg9[%c0_9, %c0_10, %c0_11] : memref<1x24x128xf32, #tpu.memory_space<vmem>>, vector<1x24x128xf32>
      %18 = vector.shape_cast %17 : vector<1x24x128xf32> to vector<24x128xf32>
      %19 = vector.shape_cast %16 : vector<24x128xf32> to vector<1x24x128xf32>
      tpu.vector_store %arg9[%c0_9, %c0_10, %c0_11], %19 {strides = array<i32>} : memref<1x24x128xf32, #tpu.memory_space<vmem>>, vector<1x24x128xf32>,
      %20 = math.tanh %16 : vector<24x128xf32>
      %c0_12 = arith.constant 0 : index
      %c0_13 = arith.constant 0 : index
      %21 = vector.load %arg10[%c0_12, %c0_13] : memref<24x128xf32, #tpu.memory_space<vmem>>, vector<24x128xf32>
      tpu.vector_store %arg10[%c0_12, %c0_13], %20 {strides = array<i32>} : memref<24x128xf32, #tpu.memory_space<vmem>>, vector<24x128xf32>,
    } else {
    }
    %c0_i32_1 = arith.constant 0 : i32
    %3 = arith.cmpi sgt, %arg0, %c0_i32_1 : i32
    %4 = arith.extui %3 : i1 to i32
    %c0_i32_2 = arith.constant 0 : i32
    %5 = arith.cmpi ne, %4, %c0_i32_2 : i32
    scf.if %5 {
      %c0 = arith.constant 0 : index
      %c0_4 = arith.constant 0 : index
      %9 = vector.load %arg10[%c0, %c0_4] : memref<24x128xf32, #tpu.memory_space<vmem>>, vector<24x128xf32>
      %10 = arith.truncf %9 : vector<24x128xf32> to vector<24x128xbf16>
      %c0_5 = arith.constant 0 : index
      %c0_6 = arith.constant 0 : index
      %c0_7 = arith.constant 0 : index
      %11 = vector.load %arg4[%c0_5, %c0_6, %c0_7] : memref<1x128x128xbf16, #tpu.memory_space<vmem>>, vector<1x128x128xbf16>
      %12 = vector.shape_cast %11 : vector<1x128x128xbf16> to vector<128x128xbf16>
      %cst = arith.constant dense<0.000000e+00> : vector<24x128xf32>
      %13 = tpu.matmul %10, %12, %cst {dimension_numbers = #tpu.dot_dimension_numbers<[1], [0], [0], [1], [0, 0, 1, 1], [], []>} : vector<24x128xbf16>, vector<128x128xbf16>, vector<24x128xf32> -> vector<24x128xf32>
      %c0_8 = arith.constant 0 : index
      %c0_9 = arith.constant 0 : index
      %c0_10 = arith.constant 0 : index
      %14 = vector.load %arg5[%c0_8, %c0_9, %c0_10] : memref<1x1x128xf32, #tpu.memory_space<vmem>>, vector<1x1x128xf32>
      %15 = vector.shape_cast %14 : vector<1x1x128xf32> to vector<1x128xf32>
      %16 = vector.broadcast %15 : vector<1x128xf32> to vector<24x128xf32>
      %17 = arith.addf %13, %16 : vector<24x128xf32>
      %c0_11 = arith.constant 0 : index
      %c0_12 = arith.constant 0 : index
      %c0_13 = arith.constant 0 : index
      %18 = vector.load %arg9[%c0_11, %c0_12, %c0_13] : memref<1x24x128xf32, #tpu.memory_space<vmem>>, vector<1x24x128xf32>
      %19 = vector.shape_cast %18 : vector<1x24x128xf32> to vector<24x128xf32>
      %20 = vector.shape_cast %17 : vector<24x128xf32> to vector<1x24x128xf32>
      tpu.vector_store %arg9[%c0_11, %c0_12, %c0_13], %20 {strides = array<i32>} : memref<1x24x128xf32, #tpu.memory_space<vmem>>, vector<1x24x128xf32>,
      %21 = math.tanh %17 : vector<24x128xf32>
      %c0_14 = arith.constant 0 : index
      %c0_15 = arith.constant 0 : index
      %22 = vector.load %arg10[%c0_14, %c0_15] : memref<24x128xf32, #tpu.memory_space<vmem>>, vector<24x128xf32>
      tpu.vector_store %arg10[%c0_14, %c0_15], %21 {strides = array<i32>} : memref<24x128xf32, #tpu.memory_space<vmem>>, vector<24x128xf32>,
    } else {
    }
    %c2_i32 = arith.constant 2 : i32
    %6 = arith.cmpi eq, %arg0, %c2_i32 : i32
    %7 = arith.extui %6 : i1 to i32
    %c0_i32_3 = arith.constant 0 : i32
    %8 = arith.cmpi ne, %7, %c0_i32_3 : i32
    scf.if %8 {
      %c0 = arith.constant 0 : index
      %c0_4 = arith.constant 0 : index
      %9 = vector.load %arg10[%c0, %c0_4] : memref<24x128xf32, #tpu.memory_space<vmem>>, vector<24x128xf32>
      %c0_5 = arith.constant 0 : index
      %c0_6 = arith.constant 0 : index
      %10 = vector.load %arg6[%c0_5, %c0_6] : memref<1x128xf32, #tpu.memory_space<vmem>>, vector<1x128xf32>
      %11 = vector.broadcast %10 : vector<1x128xf32> to vector<24x128xf32>
      %12 = arith.mulf %9, %11 : vector<24x128xf32>
      %cst = arith.constant dense<0.000000e+00> : vector<24xf32>
      %13 = vector.multi_reduction <add>, %12, %cst [1] : vector<24x128xf32> to vector<24xf32>
      %14 = vector.shape_cast %13 : vector<24xf32> to vector<24x1xf32>
      %c0_7 = arith.constant 0 : index
      %c0_8 = arith.constant 0 : index
      %15 = vector.load %arg7[%c0_7, %c0_8] : memref<1x1xf32, #tpu.memory_space<vmem>>, vector<1x1xf32>
      %16 = vector.broadcast %15 : vector<1x1xf32> to vector<24x1xf32>
      %17 = arith.addf %14, %16 : vector<24x1xf32>
      %c0_9 = arith.constant 0 : index
      %c0_10 = arith.constant 0 : index
      %18 = vector.load %arg8[%c0_9, %c0_10] : memref<24x1xf32, #tpu.memory_space<vmem>>, vector<24x1xf32>
      tpu.vector_store %arg8[%c0_9, %c0_10], %17 {strides = array<i32>} : memref<24x1xf32, #tpu.memory_space<vmem>>, vector<24x1xf32>,
    } else {
    }
    return
  }
  func.func @transform_0(%arg0: i32) -> (i32, i32) {
    %c0_i32 = arith.constant 0 : i32
    %c0_i32_0 = arith.constant 0 : i32
    %c0_i32_1 = arith.constant 0 : i32
    return %c0_i32, %c0_i32_0 : i32, i32
  }
  func.func @transform_1(%arg0: i32) -> (i32, i32) {
    %c0_i32 = arith.constant 0 : i32
    %c0_i32_0 = arith.constant 0 : i32
    %c0_i32_1 = arith.constant 0 : i32
    return %c0_i32, %c0_i32_0 : i32, i32
  }
  func.func @transform_2(%arg0: i32) -> (i32, i32) {
    %c0_i32 = arith.constant 0 : i32
    %c0_i32_0 = arith.constant 0 : i32
    %c0_i32_1 = arith.constant 0 : i32
    return %c0_i32, %c0_i32_0 : i32, i32
  }
  func.func @transform_3(%arg0: i32) -> (i32, i32, i32) {
    %c1_i32 = arith.constant 1 : i32
    %0 = arith.subi %arg0, %c1_i32 : i32
    %c0_i32 = arith.constant 0 : i32
    %1 = arith.maxsi %0, %c0_i32 : i32
    %c0_i32_0 = arith.constant 0 : i32
    %c0_i32_1 = arith.constant 0 : i32
    %c0_i32_2 = arith.constant 0 : i32
    return %1, %c0_i32_0, %c0_i32_1 : i32, i32, i32
  }
  func.func @transform_4(%arg0: i32) -> (i32, i32, i32) {
    %c1_i32 = arith.constant 1 : i32
    %0 = arith.subi %arg0, %c1_i32 : i32
    %c0_i32 = arith.constant 0 : i32
    %1 = arith.maxsi %0, %c0_i32 : i32
    %c0_i32_0 = arith.constant 0 : i32
    %c0_i32_1 = arith.constant 0 : i32
    %c0_i32_2 = arith.constant 0 : i32
    return %1, %c0_i32_0, %c0_i32_1 : i32, i32, i32
  }
  func.func @transform_5(%arg0: i32) -> (i32, i32) {
    %c0_i32 = arith.constant 0 : i32
    %c0_i32_0 = arith.constant 0 : i32
    %c0_i32_1 = arith.constant 0 : i32
    return %c0_i32, %c0_i32_0 : i32, i32
  }
  func.func @transform_6(%arg0: i32) -> (i32, i32) {
    %c0_i32 = arith.constant 0 : i32
    %c0_i32_0 = arith.constant 0 : i32
    %c0_i32_1 = arith.constant 0 : i32
    return %c0_i32, %c0_i32_0 : i32, i32
  }
  func.func @transform_7(%arg0: i32) -> (i32, i32) {
    %c0_i32 = arith.constant 0 : i32
    %c0_i32_0 = arith.constant 0 : i32
    %c0_i32_1 = arith.constant 0 : i32
    return %c0_i32, %c0_i32_0 : i32, i32
  }
  func.func @transform_8(%arg0: i32) -> (i32, i32, i32) {
    %c0_i32 = arith.constant 0 : i32
    %c0_i32_0 = arith.constant 0 : i32
    %c0_i32_1 = arith.constant 0 : i32
    return %arg0, %c0_i32, %c0_i32_0 : i32, i32, i32
  }
}

</mosaic_0001>

<llo_original>
// kernel: tpu_custom_call.1
$region0: #{tpu_custom_call.1}
  #allocation0 [shape = 'u32[]', space=smem, size = 0x4, offset = 0x4, fixed_abs, tag = 'smem constant byte address 0x4 - core index']
  #allocation1 [shape = 'u32[144,128]{1,0:T(1,128)}', space=vmem, size = 0x12000, scoped, tag = 'internal scratch']
  #allocation2 [shape = 'f32[24,128]{1,0:T(8,128)}', space=vmem, size = 0x3000, scoped, tag = 'scratch operand']
  #allocation3 [shape = 'f32[1,1]{1,0:T(1,128)S(1)}', space=vmem, size = 0x200, scoped, tag = 'scoped memory for tpu_custom_call.1']
  %s0 = inlined_call_operand.vmem [shape: f32[24,1], index: 0, kind: input, shape index: {}]
  %s1 = inlined_call_operand.vmem [shape: f32[1,128], index: 1, kind: input, shape index: {}]
  %s2 = inlined_call_operand.vmem [shape: f32[1,128], index: 2, kind: input, shape index: {}]
  %s3 = inlined_call_operand.hbm [shape: bf16[2,128,128], index: 3, kind: input, shape index: {}]
  %s4 = inlined_call_operand.vmem [shape: f32[2,1,128], index: 4, kind: input, shape index: {}]
  %s5 = inlined_call_operand.vmem [shape: f32[1,128], index: 5, kind: input, shape index: {}]
  %s6 = inlined_call_operand.<no memory space> [shape: f32[1,1], index: 6, kind: input, shape index: {}]
  %s7 = inlined_call_operand.vmem [shape: f32[24,1], index: 7, kind: output, shape index: {0}]
  %s8 = inlined_call_operand.hbm [shape: f32[3,24,128], index: 8, kind: output, shape index: {1}]
  %9 = xla_tuple %s7, %s8
  %s10 = sld [smem:[#allocation0]]
  $region85: #{tpu_custom_call.1} parent=0
    _
  %s12 = ssub.s32 1, %s10
  %s13 = scalar_select 0, %s12, %s10
  %v14 = vstv %s6
  %15 = vst [vmem:[#allocation3] sm:$0x1] %v14
  $region1: #{tpu_custom_call.1} parent=0
    #allocation4 [shape = 'u8[65536]{0}', space=vmem, size = 0x10000, scoped, tag = 'input window, operand 3']
    #allocation5 [shape = 's32[2]{0}', space=sflag, size = 0x8, scoped, tag = 'scoped memory for tpu_custom_call.1']
    #allocation6 [shape = 's32[2]{0}', space=sflag, size = 0x8, scoped, tag = 'scoped memory for tpu_custom_call.1']
    #allocation7 [shape = 'u8[24576]{0}', space=vmem, size = 0x6000, scoped, tag = 'output window, operand 1']
    %16 = vsyncpa [#allocation5], 0
    %s17 = scalar_lea.sflag [#allocation5], 1
    %18 = vsyncpa %s17, 0
    %19 = vsyncpa [#allocation6], 0
    %s20 = scalar_lea.sflag [#allocation6], 1
    %21 = vsyncpa %s20, 0
    loop: start=0, step=1, limit=5
    $region2: #{tpu_custom_call.1} parent=1 // loop_pre_header
      _
    $region3: #{tpu_custom_call.1} parent=1 // loop_header
      %s23 = sphi 0, %s27
      %p24 = scmp.ge.s32.totalorder %s23, 5
      %s31 = sphi 0, %s31
      %s33 = sphi 0, %s31
      %s34 = sphi 0, %s33
      %s48 = sphi 0, %s34
      %s52 = sphi 0, %s52
      %s54 = sphi 0, %s52
      %s55 = sphi 0, %s54
      %s69 = sphi 0, %s55
      %s73 = sphi 0, %s73
      %s75 = sphi 0, %s73
      %s76 = sphi 0, %s75
      %s90 = sphi 0, %s76
      %s102 = sphi 0, %s104
      %s105 = sphi 0, %s102
      %s106 = sphi 0, %s105
      %s122 = sphi 0, %s106
      %s134 = sphi 0, %s136
      %s137 = sphi 0, %s134
      %s138 = sphi 0, %s137
      %s154 = sphi 0, %s138
      %s158 = sphi 0, %s158
      %s160 = sphi 0, %s158
      %s161 = sphi 0, %s160
      %s175 = sphi 0, %s161
      %s179 = sphi 0, %s179
      %s181 = sphi 0, %s179
      %s182 = sphi 0, %s181
      %s196 = sphi 0, %s182
      %s200 = sphi 0, %s200
      %s202 = sphi 0, %s200
      %s203 = sphi 0, %s202
      %s217 = sphi 0, %s203
      %s223 = sphi 0, %s225
      %s226 = sphi 0, %s223
      %s227 = sphi 0, %s226
      %s243 = sphi 0, %s227
    $region4: #{tpu_custom_call.1} parent=1 // loop_header_branch
      %26 = sbr.rel (%p24) target = $region8
    $region5: #{tpu_custom_call.1} parent=1 // loop_body
      %s28 = ssub.s32 %s23, 1
      %s29 = ssub.s32 %s23, 2
      %s30 = sadd.s32 %s23, 1
      %s32 = sadd.s32 %s31, 1
      %p35 = scmp.eq.s32.totalorder %s23, 2
      %p36 = scmp.ne.s32.totalorder %s31, %s33
      %p37 = scmp.eq.s32.totalorder %s23, 0
      %p38 = por %p36, %p37
      %p39 = scmp.ne.s32.totalorder %s31, %s33
      %p40 = scmp.eq.s32.totalorder %s28, 2
      %p41 = por %p39, %p40
      %p42 = scmp.ne.s32.totalorder %s33, %s34
      %p43 = scmp.eq.s32.totalorder %s28, 0
      %p44 = por %p42, %p43
      %p45 = scmp.ne.s32.totalorder %s33, %s34
      %p46 = scmp.eq.s32.totalorder %s29, 2
      %p47 = por %p45, %p46
      %p49 = scmp.ne.s32.totalorder %s34, %s48
      %p50 = scmp.eq.s32.totalorder %s29, 0
      %p51 = por %p49, %p50
      %s53 = sadd.s32 %s52, 1
      %p56 = scmp.eq.s32.totalorder %s23, 2
      %p57 = scmp.ne.s32.totalorder %s52, %s54
      %p58 = scmp.eq.s32.totalorder %s23, 0
      %p59 = por %p57, %p58
      %p60 = scmp.ne.s32.totalorder %s52, %s54
      %p61 = scmp.eq.s32.totalorder %s28, 2
      %p62 = por %p60, %p61
      %p63 = scmp.ne.s32.totalorder %s54, %s55
      %p64 = scmp.eq.s32.totalorder %s28, 0
      %p65 = por %p63, %p64
      %p66 = scmp.ne.s32.totalorder %s54, %s55
      %p67 = scmp.eq.s32.totalorder %s29, 2
      %p68 = por %p66, %p67
      %p70 = scmp.ne.s32.totalorder %s55, %s69
      %p71 = scmp.eq.s32.totalorder %s29, 0
      %p72 = por %p70, %p71
      %s74 = sadd.s32 %s73, 1
      %p77 = scmp.eq.s32.totalorder %s23, 2
      %p78 = scmp.ne.s32.totalorder %s73, %s75
      %p79 = scmp.eq.s32.totalorder %s23, 0
      %p80 = por %p78, %p79
      %p81 = scmp.ne.s32.totalorder %s73, %s75
      %p82 = scmp.eq.s32.totalorder %s28, 2
      %p83 = por %p81, %p82
      %p84 = scmp.ne.s32.totalorder %s75, %s76
      %p85 = scmp.eq.s32.totalorder %s28, 0
      %p86 = por %p84, %p85
      %p87 = scmp.ne.s32.totalorder %s75, %s76
      %p88 = scmp.eq.s32.totalorder %s29, 2
      %p89 = por %p87, %p88
      %p91 = scmp.ne.s32.totalorder %s76, %s90
      %p92 = scmp.eq.s32.totalorder %s29, 0
      %p93 = por %p91, %p92
      %s94 = ssub.s32 %s23, 1
      %p95 = scmp.gt.s32.totalorder %s94, 0
      %s96 = scalar_select %p95, %s94, 0
      %s97 = ssub.s32 %s30, 1
      %p98 = scmp.gt.s32.totalorder %s97, 0
      %s99 = scalar_select %p98, %s97, 0
      %s100 = ssub.s32 %s96, %s99
      %p101 = scmp.eq.s32.totalorder %s100, 0
      %s103 = sadd.s32 %s102, 1
      %s104 = scalar_select %p101, %s102, %s103
      %p107 = pneg %p101
      %p108 = scmp.eq.s32.totalorder %s23, 2
      %p109 = por %p107, %p108
      %p110 = scmp.ne.s32.totalorder %s102, %s105
      %p111 = scmp.eq.s32.totalorder %s23, 0
      %p112 = por %p110, %p111
      %p113 = scmp.ne.s32.totalorder %s102, %s105
      %p114 = scmp.eq.s32.totalorder %s28, 2
      %p115 = por %p113, %p114
      %p116 = scmp.ne.s32.totalorder %s105, %s106
      %p117 = scmp.eq.s32.totalorder %s28, 0
      %p118 = por %p116, %p117
      %p119 = scmp.ne.s32.totalorder %s105, %s106
      %p120 = scmp.eq.s32.totalorder %s29, 2
      %p121 = por %p119, %p120
      %p123 = scmp.ne.s32.totalorder %s106, %s122
      %p124 = scmp.eq.s32.totalorder %s29, 0
      %p125 = por %p123, %p124
      %s126 = ssub.s32 %s23, 1
      %p127 = scmp.gt.s32.totalorder %s126, 0
      %s128 = scalar_select %p127, %s126, 0
      %s129 = ssub.s32 %s30, 1
      %p130 = scmp.gt.s32.totalorder %s129, 0
      %s131 = scalar_select %p130, %s129, 0
      %s132 = ssub.s32 %s128, %s131
      %p133 = scmp.eq.s32.totalorder %s132, 0
      %s135 = sadd.s32 %s134, 1
      %s136 = scalar_select %p133, %s134, %s135
      %p139 = pneg %p133
      %p140 = scmp.eq.s32.totalorder %s23, 2
      %p141 = por %p139, %p140
      %p142 = scmp.ne.s32.totalorder %s134, %s137
      %p143 = scmp.eq.s32.totalorder %s23, 0
      %p144 = por %p142, %p143
      %p145 = scmp.ne.s32.totalorder %s134, %s137
      %p146 = scmp.eq.s32.totalorder %s28, 2
      %p147 = por %p145, %p146
      %p148 = scmp.ne.s32.totalorder %s137, %s138
      %p149 = scmp.eq.s32.totalorder %s28, 0
      %p150 = por %p148, %p149
      %p151 = scmp.ne.s32.totalorder %s137, %s138
      %p152 = scmp.eq.s32.totalorder %s29, 2
      %p153 = por %p151, %p152
      %p155 = scmp.ne.s32.totalorder %s138, %s154
      %p156 = scmp.eq.s32.totalorder %s29, 0
      %p157 = por %p155, %p156
      %s159 = sadd.s32 %s158, 1
      %p162 = scmp.eq.s32.totalorder %s23, 2
      %p163 = scmp.ne.s32.totalorder %s158, %s160
      %p164 = scmp.eq.s32.totalorder %s23, 0
      %p165 = por %p163, %p164
      %p166 = scmp.ne.s32.totalorder %s158, %s160
      %p167 = scmp.eq.s32.totalorder %s28, 2
      %p168 = por %p166, %p167
      %p169 = scmp.ne.s32.totalorder %s160, %s161
      %p170 = scmp.eq.s32.totalorder %s28, 0
      %p171 = por %p169, %p170
      %p172 = scmp.ne.s32.totalorder %s160, %s161
      %p173 = scmp.eq.s32.totalorder %s29, 2
      %p174 = por %p172, %p173
      %p176 = scmp.ne.s32.totalorder %s161, %s175
      %p177 = scmp.eq.s32.totalorder %s29, 0
      %p178 = por %p176, %p177
      %s180 = sadd.s32 %s179, 1
      %p183 = scmp.eq.s32.totalorder %s23, 2
      %p184 = scmp.ne.s32.totalorder %s179, %s181
      %p185 = scmp.eq.s32.totalorder %s23, 0
      %p186 = por %p184, %p185
      %p187 = scmp.ne.s32.totalorder %s179, %s181
      %p188 = scmp.eq.s32.totalorder %s28, 2
      %p189 = por %p187, %p188
      %p190 = scmp.ne.s32.totalorder %s181, %s182
      %p191 = scmp.eq.s32.totalorder %s28, 0
      %p192 = por %p190, %p191
      %p193 = scmp.ne.s32.totalorder %s181, %s182
      %p194 = scmp.eq.s32.totalorder %s29, 2
      %p195 = por %p193, %p194
      %p197 = scmp.ne.s32.totalorder %s182, %s196
      %p198 = scmp.eq.s32.totalorder %s29, 0
      %p199 = por %p197, %p198
      %s201 = sadd.s32 %s200, 1
      %p204 = scmp.eq.s32.totalorder %s23, 2
      %p205 = scmp.ne.s32.totalorder %s200, %s202
      %p206 = scmp.eq.s32.totalorder %s23, 0
      %p207 = por %p205, %p206
      %p208 = scmp.ne.s32.totalorder %s200, %s202
      %p209 = scmp.eq.s32.totalorder %s28, 2
      %p210 = por %p208, %p209
      %p211 = scmp.ne.s32.totalorder %s202, %s203
      %p212 = scmp.eq.s32.totalorder %s28, 0
      %p213 = por %p211, %p212
      %p214 = scmp.ne.s32.totalorder %s202, %s203
      %p215 = scmp.eq.s32.totalorder %s29, 2
      %p216 = por %p214, %p215
      %p218 = scmp.ne.s32.totalorder %s203, %s217
      %p219 = scmp.eq.s32.totalorder %s29, 0
      %p220 = por %p218, %p219
      %s221 = ssub.s32 %s23, %s30
      %p222 = scmp.eq.s32.totalorder %s221, 0
      %s224 = sadd.s32 %s223, 1
      %s225 = scalar_select %p222, %s223, %s224
      %p228 = pneg %p222
      %p229 = scmp.eq.s32.totalorder %s23, 2
      %p230 = por %p228, %p229
      %p231 = scmp.ne.s32.totalorder %s223, %s226
      %p232 = scmp.eq.s32.totalorder %s23, 0
      %p233 = por %p231, %p232
      %p234 = scmp.ne.s32.totalorder %s223, %s226
      %p235 = scmp.eq.s32.totalorder %s28, 2
      %p236 = por %p234, %p235
      %p237 = scmp.ne.s32.totalorder %s226, %s227
      %p238 = scmp.eq.s32.totalorder %s28, 0
      %p239 = por %p237, %p238
      %p240 = scmp.ne.s32.totalorder %s226, %s227
      %p241 = scmp.eq.s32.totalorder %s29, 2
      %p242 = por %p240, %p241
      %p244 = scmp.ne.s32.totalorder %s227, %s243
      %p245 = scmp.eq.s32.totalorder %s29, 0
      %p246 = por %p244, %p245
      %p247 = scmp.le.s32.totalorder 1, %s23
      %p248 = scmp.lt.s32.totalorder %s23, 4
      %p249 = pnand %p247, %p248
      %p250 = pneg %p249
      // Predicated region
      $region9: #{tpu_custom_call.1} parent=5 // pred_check
        _
      $region10: #{tpu_custom_call.1} parent=5 // pred_check_branch
        %252 = sbr.rel (%p249) target = $region12
      $region11: #{tpu_custom_call.1} parent=5 // pred_region
        %s253 = ssub.s32 %s23, 1
        // Predicated region
        $region13: #{tpu_custom_call.1} parent=11 // pred_check
          %p254 = pneg %p44
        $region14: #{tpu_custom_call.1} parent=11 // pred_check_branch
          %256 = sbr.rel (%p254) target = $region16
        $region15: #{tpu_custom_call.1} parent=11 // pred_region
          _
        $region16: #{tpu_custom_call.1} parent=11 // pred_fallthru
          _
        // Predicated region
        $region17: #{tpu_custom_call.1} parent=11 // pred_check
          %p257 = pneg %p65
        $region18: #{tpu_custom_call.1} parent=11 // pred_check_branch
          %259 = sbr.rel (%p257) target = $region20
        $region19: #{tpu_custom_call.1} parent=11 // pred_region
          _
        $region20: #{tpu_custom_call.1} parent=11 // pred_fallthru
          _
        // Predicated region
        $region21: #{tpu_custom_call.1} parent=11 // pred_check
          %p260 = pneg %p86
        $region22: #{tpu_custom_call.1} parent=11 // pred_check_branch
          %262 = sbr.rel (%p260) target = $region24
        $region23: #{tpu_custom_call.1} parent=11 // pred_region
          _
        $region24: #{tpu_custom_call.1} parent=11 // pred_fallthru
          _
        // Predicated region
        $region25: #{tpu_custom_call.1} parent=11 // pred_check
          %p263 = pneg %p171
        $region26: #{tpu_custom_call.1} parent=11 // pred_check_branch
          %265 = sbr.rel (%p263) target = $region28
        $region27: #{tpu_custom_call.1} parent=11 // pred_region
          _
        $region28: #{tpu_custom_call.1} parent=11 // pred_fallthru
          _
        // Predicated region
        $region29: #{tpu_custom_call.1} parent=11 // pred_check
          %p266 = pneg %p192
        $region30: #{tpu_custom_call.1} parent=11 // pred_check_branch
          %268 = sbr.rel (%p266) target = $region32
        $region31: #{tpu_custom_call.1} parent=11 // pred_region
          _
        $region32: #{tpu_custom_call.1} parent=11 // pred_fallthru
          _
      $region12: #{tpu_custom_call.1} parent=5 // pred_fallthru
        _
      %p269 = scmp.lt.s32.totalorder %s23, 3
      // Predicated region
      $region33: #{tpu_custom_call.1} parent=5 // pred_check
        %p270 = pneg %p269
      $region34: #{tpu_custom_call.1} parent=5 // pred_check_branch
        %272 = sbr.rel (%p270) target = $region36
      $region35: #{tpu_custom_call.1} parent=5 // pred_region
        // Predicated region
        $region37: #{tpu_custom_call.1} parent=35 // pred_check
          %p273 = pneg %p112
        $region38: #{tpu_custom_call.1} parent=35 // pred_check_branch
          %275 = sbr.rel (%p273) target = $region40
        $region39: #{tpu_custom_call.1} parent=35 // pred_region
          %s276 = sand.u32 %s102, 1
          %s277 = scalar_lea.sflag [#allocation5], %s276
          %s278 = sand.u32 %s102, 1
          %s279 = smul.addr %s278, 64
          %s280 = scalar_lea.vmem [#allocation4], %s279
          %s281 = ssub.s32 %s23, 1
          %p282 = scmp.gt.s32.totalorder %s281, 0
          %s283 = scalar_select %p282, %s281, 0
          %s285 = ssub.s32 1024, 1024
          %286 = vsyncadd %s277, %s285
          %s287 = smul.addr %s283, 16
          %s288 = smul.addr %s287, 64
          %s289 = scalar_lea.hbm %s3, %s288
          %s290 = sshll.u32 %s280, 4
          %s291 = int_to_ptr.vmem [resolvable:$true] %s290
          %296 = dma.hbm_to_vmem [thread:$0]  %s289, 1024, %s291, %s277, 64, 64, 4
        $region40: #{tpu_custom_call.1} parent=35 // pred_fallthru
          _
        // Predicated region
        $region41: #{tpu_custom_call.1} parent=35 // pred_check
          %p297 = pneg %p144
        $region42: #{tpu_custom_call.1} parent=35 // pred_check_branch
          %299 = sbr.rel (%p297) target = $region44
        $region43: #{tpu_custom_call.1} parent=35 // pred_region
          %s300 = ssub.s32 %s23, 1
          %p301 = scmp.gt.s32.totalorder %s300, 0
          %s302 = scalar_select %p301, %s300, 0
          %p303 = scmp.lt.s32.totalorder %s302, 1
          %s304 = scalar_select %p303, %s302, 1
          %s305 = scalar_lea.vmem %s4, %s304
          %s306 = ssub.s32 %s23, 1
          %p307 = scmp.gt.s32.totalorder %s306, 0
          %s308 = scalar_select %p307, %s306, 0
        $region44: #{tpu_custom_call.1} parent=35 // pred_fallthru
          _
      $region36: #{tpu_custom_call.1} parent=5 // pred_fallthru
        _
      %p309 = scmp.le.s32.totalorder 1, %s23
      %p310 = scmp.lt.s32.totalorder %s23, 4
      %p311 = pnand %p309, %p310
      %p312 = pneg %p311
      // Predicated region
      $region45: #{tpu_custom_call.1} parent=5 // pred_check
        _
      $region46: #{tpu_custom_call.1} parent=5 // pred_check_branch
        %314 = sbr.rel (%p311) target = $region48
      $region47: #{tpu_custom_call.1} parent=5 // pred_region
        %s315 = ssub.s32 %s23, 1
        %s316 = sand.u32 %s105, 1
        %s317 = scalar_lea.sflag [#allocation5], %s316
        %s318 = sand.u32 %s105, 1
        %s319 = smul.addr %s318, 64
        %s320 = scalar_lea.vmem [#allocation4], %s319
        // Predicated region
        $region49: #{tpu_custom_call.1} parent=47 // pred_check
          %p321 = pneg %p118
        $region50: #{tpu_custom_call.1} parent=47 // pred_check_branch
          %323 = sbr.rel (%p321) target = $region52
        $region51: #{tpu_custom_call.1} parent=47 // pred_region
          %324 = dma.done %s317, 1024
        $region52: #{tpu_custom_call.1} parent=47 // pred_fallthru
          _
        %p325 = pneg %p44
        %p326 = pneg %p41
        %p327 = pneg %p65
        %p328 = pneg %p62
        %p329 = pneg %p86
        %p330 = pneg %p83
        %s331 = sand.u32 %s105, 1
        %s332 = scalar_lea.sflag [#allocation5], %s331
        %s333 = sand.u32 %s105, 1
        %s334 = smul.addr %s333, 64
        %s335 = scalar_lea.vmem [#allocation4], %s334
        %p336 = pneg %p118
        %p337 = pneg %p115
        %s338 = ssub.s32 %s28, 1
        %p339 = scmp.gt.s32.totalorder %s338, 0
        %s340 = scalar_select %p339, %s338, 0
        %p341 = scmp.lt.s32.totalorder %s340, 1
        %s342 = scalar_select %p341, %s340, 1
        %s343 = scalar_lea.vmem %s4, %s342
        %p344 = pneg %p150
        %p345 = pneg %p147
        %p346 = pneg %p171
        %p347 = pneg %p168
        %p348 = pneg %p192
        %p349 = pneg %p189
        %p350 = pneg %p213
        %p351 = pneg %p210
        %p352 = pneg %p239
        %p353 = pneg %p236
        %s354 = sand.u32 %s226, 1
        %s355 = scalar_lea.sflag [#allocation6], %s354
        %s356 = sand.u32 %s226, 1
        %s357 = smul.addr %s356, 24
        %s358 = scalar_lea.vmem [#allocation7], %s357
        %s359 = ssub.s32 %s28, 1
        %p360 = scmp.gt.s32.totalorder %s359, 0
        %s361 = scalar_select %p360, %s359, 0
        %s362 = ssub.s32 %s28, 1
        %p363 = scmp.gt.s32.totalorder %s362, 0
        %s364 = scalar_select %p363, %s362, 0
        %p365 = scmp.lt.s32.totalorder %s364, 1
        %s366 = scalar_select %p365, %s364, 1
        %s367 = scalar_lea.vmem %s4, %s366
        %s368 = ssub.s32 %s28, 1
        %p369 = scmp.gt.s32.totalorder %s368, 0
        %s370 = scalar_select %p369, %s368, 0
        %p372 = scmp.eq.s32.totalorder %s28, 0
        // Predicated region
        $region53: #{tpu_custom_call.1} parent=47 // pred_check
          %p373 = pneg %p372
        $region54: #{tpu_custom_call.1} parent=47 // pred_check_branch
          %375 = sbr.rel (%p373) target = $region56
        $region55: #{tpu_custom_call.1} parent=47 // pred_region
          %v376 = vld [vmem:[%s0] sm:$0xff]
          %v377 = vld [vmem:[%s0 + $0x8] sm:$0xff]
          %v378 = vld [vmem:[%s0 + $0x10] sm:$0xff]
          %v379 = vld [vmem:[%s1] sm:$0x1]
          %381 = vset.pattern.permute.xlu0 0
          %382 = vperm.xlu0 %381, %v376
          %v383 = vpop.permute.xlu0 %382
          %386 = vset.pattern.permute.xlu0 0
          %387 = vperm.xlu0 %386, %v377
          %v388 = vpop.permute.xlu0 %387
          %391 = vset.pattern.permute.xlu0 0
          %392 = vperm.xlu0 %391, %v378
          %v393 = vpop.permute.xlu0 %392
          %v396 = vlaneseq
          %v397 = vshrl.u32 %v396, 7
          %v398 = vsub.s32 0, %v397
          %v399 = vrot.slane %v379, %v398
          %v401 = vmul.f32 %v383, %v399
          %v402 = vmul.f32 %v388, %v399
          %v403 = vmul.f32 %v393, %v399
          %v404 = vld [vmem:[%s2] sm:$0x1]
          %v406 = vlaneseq
          %v407 = vshrl.u32 %v406, 7
          %v408 = vsub.s32 0, %v407
          %v409 = vrot.slane %v404, %v408
          %v411 = vadd.f32 %v401, %v409
          %v412 = vadd.f32 %v402, %v409
          %v413 = vadd.f32 %v403, %v409
          %414 = vst [vmem:[%s358] sm:$0xff] %v411
          %415 = vst [vmem:[%s358 + $0x8] sm:$0xff] %v412
          %416 = vst [vmem:[%s358 + $0x10] sm:$0xff] %v413
          %v417 = vtanh.pop %v411
          %v418 = vtanh.pop %v412
          %v419 = vtanh.pop %v413
          %420 = vst [vmem:[#allocation2] sm:$0xff] %v417
          %421 = vst [vmem:[#allocation2 + $0x8] sm:$0xff] %v418
          %422 = vst [vmem:[#allocation2 + $0x10] sm:$0xff] %v419
        $region56: #{tpu_custom_call.1} parent=47 // pred_fallthru
          _
        %p423 = scmp.gt.s32.totalorder %s28, 0
        // Predicated region
        $region57: #{tpu_custom_call.1} parent=47 // pred_check
          %p424 = pneg %p423
        $region58: #{tpu_custom_call.1} parent=47 // pred_check_branch
          %426 = sbr.rel (%p424) target = $region60
        $region59: #{tpu_custom_call.1} parent=47 // pred_region
          %v427 = vld [vmem:[#allocation2] sm:$0xff]
          %v428 = vld [vmem:[#allocation2 + $0x8] sm:$0xff]
          %v429 = vld [vmem:[#allocation2 + $0x10] sm:$0xff]
          %v430 = vpack.c.bf16 %v428, %v427
          %v431 = vpack.c.bf16 %v429, %v429
          %v432 = vld [vmem:[%s320] sm:$0xf]
          %v433 = vld [vmem:[%s320 + $0x4] sm:$0xf]
          %v434 = vld [vmem:[%s320 + $0x8] sm:$0xf]
          %v435 = vld [vmem:[%s320 + $0xc] sm:$0xf]
          %v436 = vld [vmem:[%s320 + $0x10] sm:$0xf]
          %v437 = vld [vmem:[%s320 + $0x14] sm:$0xf]
          %v438 = vld [vmem:[%s320 + $0x18] sm:$0xf]
          %v439 = vld [vmem:[%s320 + $0x1c] sm:$0xf]
          %v440 = vld [vmem:[%s320 + $0x20] sm:$0xf]
          %v441 = vld [vmem:[%s320 + $0x24] sm:$0xf]
          %v442 = vld [vmem:[%s320 + $0x28] sm:$0xf]
          %v443 = vld [vmem:[%s320 + $0x2c] sm:$0xf]
          %v444 = vld [vmem:[%s320 + $0x30] sm:$0xf]
          %v445 = vld [vmem:[%s320 + $0x34] sm:$0xf]
          %v446 = vld [vmem:[%s320 + $0x38] sm:$0xf]
          %v447 = vld [vmem:[%s320 + $0x3c] sm:$0xf]
          %v448 = vld [vmem:[%s367] sm:$0x1]
          %v450 = vlaneseq
          %v451 = vshrl.u32 %v450, 7
          %v452 = vsub.s32 0, %v451
          %v453 = vrot.slane %v448, %v452
          %v471 = vunpack.c.l.b16 %v432
          %v472 = vunpack.c.l.b16 %v433
          %v473 = vunpack.c.l.b16 %v434
          %v474 = vunpack.c.l.b16 %v435
          %v475 = vunpack.c.l.b16 %v436
          %v476 = vunpack.c.l.b16 %v437
          %v477 = vunpack.c.l.b16 %v438
          %v478 = vunpack.c.l.b16 %v439
          %v479 = vunpack.c.l.b16 %v440
          %v480 = vunpack.c.l.b16 %v441
          %v481 = vunpack.c.l.b16 %v442
          %v482 = vunpack.c.l.b16 %v443
          %v483 = vunpack.c.l.b16 %v444
          %v484 = vunpack.c.l.b16 %v445
          %v485 = vunpack.c.l.b16 %v446
          %v486 = vunpack.c.l.b16 %v447
          %v487 = vpack.c.b16 %v472, %v471
          %v488 = vpack.c.b16 %v474, %v473
          %v489 = vpack.c.b16 %v476, %v475
          %v490 = vpack.c.b16 %v478, %v477
          %v491 = vpack.c.b16 %v480, %v479
          %v492 = vpack.c.b16 %v482, %v481
          %v493 = vpack.c.b16 %v484, %v483
          %v494 = vpack.c.b16 %v486, %v485
          %503 = vmatprep.subr.bf16.mxu0 0
          %504 = vmatpush1.bf16.msra.mxu0 %v487
          %505 = vmatprep.subr.bf16.mxu0 0
          %506 = vmatpush1.bf16.msra.mxu0 %v488
          %507 = vmatprep.subr.bf16.mxu0 0
          %508 = vmatpush1.bf16.msra.mxu0 %v489
          %509 = vmatprep.subr.bf16.mxu0 0
          %510 = vmatpush1.bf16.msra.mxu0 %v490
          %511 = vmatprep.subr.bf16.mxu0 0
          %512 = vmatpush1.bf16.msra.mxu0 %v491
          %513 = vmatprep.subr.bf16.mxu0 0
          %514 = vmatpush1.bf16.msra.mxu0 %v492
          %515 = vmatprep.subr.bf16.mxu0 0
          %516 = vmatpush1.bf16.msra.mxu0 %v493
          %517 = vmatprep.subr.bf16.mxu0 0
          %518 = vmatpush1.bf16.msra.mxu0 %v494
          %519 = vmatprep.subr.bf16.mxu0 0
          %520 = vmatpush1.bf16.msra.mxu0 0
          %521 = vmatprep.subr.bf16.mxu0 0
          %522 = vmatpush1.bf16.msra.mxu0 0
          %523 = vmatprep.subr.bf16.mxu0 0
          %524 = vmatpush1.bf16.msra.mxu0 0
          %525 = vmatprep.subr.bf16.mxu0 0
          %526 = vmatpush1.bf16.msra.mxu0 0
          %527 = vmatprep.subr.bf16.mxu0 0
          %528 = vmatpush1.bf16.msra.mxu0 0
          %529 = vmatprep.subr.bf16.mxu0 0
          %530 = vmatpush1.bf16.msra.mxu0 0
          %531 = vmatprep.subr.bf16.mxu0 0
          %532 = vmatpush1.bf16.msra.mxu0 0
          %533 = vmatprep.subr.bf16.mxu0 0
          %534 = vmatpush1.bf16.msra.mxu0 0
          %535 = vmatprep.mubr.bf16.mxu0 0
          %536 = vmatmul.mubr.bf16.gmra.mrb[0].mxu0 %v430
          %v537 = vpop.f32.mrb[0].mxu0
          %v538 = vadd.f32 %v453, %v537
          %v539 = vpop.f32.mrb[0].mxu0
          %v540 = vpop.f32.mrb[0].mxu0
          %v541 = vadd.f32 %v453, %v540
          %v542 = vpop.f32.mrb[0].mxu0
          %543 = vmatprep.mubr.bf16.mxu0 0
          %544 = vmatmul.mubr.bf16.gmra.mrb[0].mxu0 %v431
          %v545 = vpop.f32.mrb[0].mxu0
          %v546 = vadd.f32 %v453, %v545
          %v547 = vpop.f32.mrb[0].mxu0
          %v548 = vpop.f32.mrb[0].mxu0
          %v549 = vpop.f32.mrb[0].mxu0
          %550 = vdwg.mxu0
          %551 = vst [vmem:[%s358] sm:$0xff] %v538
          %552 = vst [vmem:[%s358 + $0x8] sm:$0xff] %v541
          %553 = vst [vmem:[%s358 + $0x10] sm:$0xff] %v546
          %v554 = vtanh.pop %v538
          %v555 = vtanh.pop %v541
          %v556 = vtanh.pop %v546
          %557 = vst [vmem:[#allocation2] sm:$0xff] %v554
          %558 = vst [vmem:[#allocation2 + $0x8] sm:$0xff] %v555
          %559 = vst [vmem:[#allocation2 + $0x10] sm:$0xff] %v556
        $region60: #{tpu_custom_call.1} parent=47 // pred_fallthru
          _
        %p560 = scmp.eq.s32.totalorder %s28, 2
        // Predicated region
        $region61: #{tpu_custom_call.1} parent=47 // pred_check
          %p561 = pneg %p560
        $region62: #{tpu_custom_call.1} parent=47 // pred_check_branch
          %563 = sbr.rel (%p561) target = $region64
        $region63: #{tpu_custom_call.1} parent=47 // pred_region
          %v564 = vld [vmem:[#allocation2] sm:$0xff]
          %v565 = vld [vmem:[#allocation2 + $0x8] sm:$0xff]
          %v566 = vld [vmem:[#allocation2 + $0x10] sm:$0xff]
          %v567 = vld [vmem:[%s5] sm:$0x1]
          %v569 = vlaneseq
          %v570 = vshrl.u32 %v569, 7
          %v571 = vsub.s32 0, %v570
          %v572 = vrot.slane %v567, %v571
          %v574 = vmul.f32 %v564, %v572
          %v575 = vmul.f32 %v565, %v572
          %v576 = vmul.f32 %v566, %v572
          %577 = vadd.xlane.f32.xlu0 %v574
          %v578 = vpop.xlane.xlu0 %577
          %579 = vadd.xlane.f32.xlu0 %v575
          %v580 = vpop.xlane.xlu0 %579
          %581 = vadd.xlane.f32.xlu0 %v576
          %v582 = vpop.xlane.xlu0 %581
          %v583 = vld [vmem:[#allocation3] sm:$0x1]
          %v585 = vlaneseq
          %v586 = vshrl.u32 %v585, 7
          %v587 = vsub.s32 0, %v586
          %v588 = vrot.slane %v583, %v587
          %v590 = vadd.f32 %v578, %v588
          %v591 = vadd.f32 %v580, %v588
          %v592 = vadd.f32 %v582, %v588
          %vm593 = vcmask 7168
          %594 = vst.msk [vmem:[%s7] sm:$0xff] %vm593, %v590
          %595 = vst.msk [vmem:[%s7 + $0x8] sm:$0xff] %vm593, %v591
          %596 = vst.msk [vmem:[%s7 + $0x10] sm:$0xff] %vm593, %v592
        $region64: #{tpu_custom_call.1} parent=47 // pred_fallthru
          _
        %s597 = sand.u32 %s226, 1
        %s598 = scalar_lea.sflag [#allocation6], %s597
        %s599 = sand.u32 %s226, 1
        %s600 = smul.addr %s599, 24
        %s601 = scalar_lea.vmem [#allocation7], %s600
        // Predicated region
        $region65: #{tpu_custom_call.1} parent=47 // pred_check
          %p602 = pneg %p210
        $region66: #{tpu_custom_call.1} parent=47 // pred_check_branch
          %604 = sbr.rel (%p602) target = $region68
        $region67: #{tpu_custom_call.1} parent=47 // pred_region
          _
        $region68: #{tpu_custom_call.1} parent=47 // pred_fallthru
          _
        // Predicated region
        $region69: #{tpu_custom_call.1} parent=47 // pred_check
          %p605 = pneg %p236
        $region70: #{tpu_custom_call.1} parent=47 // pred_check_branch
          %607 = sbr.rel (%p605) target = $region72
        $region71: #{tpu_custom_call.1} parent=47 // pred_region
          %s609 = ssub.s32 384, 384
          %610 = vsyncadd %s598, %s609
          %s611 = smul.addr %s28, 3
          %s612 = smul.addr %s611, 128
          %s613 = scalar_lea.hbm %s8, %s612
          %s614 = sshll.u32 %s601, 4
          %s615 = int_to_ptr.vmem [resolvable:$true] %s614
          %620 = dma.vmem_to_hbm [thread:$0]  %s615, 384, %s613, %s598, 128, 128, 8
        $region72: #{tpu_custom_call.1} parent=47 // pred_fallthru
          _
        // Predicated region
        $region73: #{tpu_custom_call.1} parent=47 // pred_check
          %p621 = pneg %p210
        $region74: #{tpu_custom_call.1} parent=47 // pred_check_branch
          %623 = sbr.rel (%p621) target = $region76
        $region75: #{tpu_custom_call.1} parent=47 // pred_region
          _
        $region76: #{tpu_custom_call.1} parent=47 // pred_fallthru
          _
      $region48: #{tpu_custom_call.1} parent=5 // pred_fallthru
        _
      %p624 = scmp.le.s32.totalorder 2, %s23
      // Predicated region
      $region77: #{tpu_custom_call.1} parent=5 // pred_check
        %p625 = pneg %p624
      $region78: #{tpu_custom_call.1} parent=5 // pred_check_branch
        %627 = sbr.rel (%p625) target = $region80
      $region79: #{tpu_custom_call.1} parent=5 // pred_region
        %s628 = ssub.s32 %s23, 2
        // Predicated region
        $region81: #{tpu_custom_call.1} parent=79 // pred_check
          %p629 = pneg %p242
        $region82: #{tpu_custom_call.1} parent=79 // pred_check_branch
          %631 = sbr.rel (%p629) target = $region84
        $region83: #{tpu_custom_call.1} parent=79 // pred_region
          %s632 = sand.u32 %s227, 1
          %s633 = scalar_lea.sflag [#allocation6], %s632
          %s634 = sand.u32 %s227, 1
          %s635 = smul.addr %s634, 24
          %s636 = scalar_lea.vmem [#allocation7], %s635
          %637 = dma.done %s633, 384
        $region84: #{tpu_custom_call.1} parent=79 // pred_fallthru
          _
      $region80: #{tpu_custom_call.1} parent=5 // pred_fallthru
        _
    $region6: #{tpu_custom_call.1} parent=1 // loop_footer
      %s27 = sadd.s32 1, %s23
    $region7: #{tpu_custom_call.1} parent=1 // loop_footer_branch
      %22 = sbr.rel target = $region3
    $region8: #{tpu_custom_call.1} parent=1 // loop_exit
      _
    %638 = vsyncpa [#allocation5], 1
    %s639 = scalar_lea.sflag [#allocation5], 1
    %640 = vsyncpa %s639, 1
    %641 = vsyncpa [#allocation6], 1
    %s642 = scalar_lea.sflag [#allocation6], 1
    %643 = vsyncpa %s642, 1

</llo_original>
